<compile_context>
chip_gen: v6e
topology: v6e:2x2x1
jax: 0.10.0
libtpu: 0.0.40
codegen_flags: <defaults>
</compile_context>

<pallas_src>
import functools

import jax
import jax.numpy as jnp
from jax import lax
from jax.experimental import pallas as pl
from jax.experimental.pallas import tpu as pltpu


def _shift_hi(a, s):
    """out[..., i] = a[..., i - s] for i >= s, else 0 (shift toward higher index)."""
    z = jnp.zeros(a.shape[:-1] + (s,), a.dtype)
    return jnp.concatenate([z, a[..., : a.shape[-1] - s]], axis=-1)


def _shift_lo(a, s):
    """out[..., i] = a[..., i + s] for i < n - s, else 0 (shift toward lower index)."""
    z = jnp.zeros(a.shape[:-1] + (s,), a.dtype)
    return jnp.concatenate([a[..., s:], z], axis=-1)


def _contrast_kernel(x_ref, w_ref, b_ref, o_ref, *, width, b_blk):
    # x_ref : (b_blk, C, HW)   NCHW with spatial flattened onto the lane axis
    # w_ref : (C, C)           BN-folded 1x1 conv weight
    # b_ref : (C, 1)           BN-folded bias
    # o_ref : (b_blk, C, HW)
    hw = x_ref.shape[-1]

    # Row-boundary masks for the horizontal taps of the 3x3 pool.
    # Hoisted out of the batch unroll (JAX does not CSE broadcast_in_dim).
    col = lax.broadcasted_iota(jnp.int32, (1, hw), 1)
    has_left = (col % width) != 0                # a left neighbour (c-1) exists
    has_right = (col % width) != (width - 1)     # a right neighbour (c+1) exists

    wmat = w_ref[...]
    bias = b_ref[...]

    for b in range(b_blk):
        xb = x_ref[b].astype(jnp.float32)        # (C, HW), HW lane-dense

        # 3x3 average pool, stride 1, zero padding 1, count_include_pad=True (/9 always).
        left = jnp.where(has_left, _shift_hi(xb, 1), 0.0)     # value from column c-1
        right = jnp.where(has_right, _shift_lo(xb, 1), 0.0)   # value from column c+1
        hsum = xb + left + right                               # horizontal 3-tap sum
        vsum = hsum + _shift_hi(hsum, width) + _shift_lo(hsum, width)  # + rows above/below
        pooled = vsum * (1.0 / 9.0)

        edge = xb - pooled
        # 1x1 conv with folded BN: (C, C) @ (C, HW) + (C, 1)
        logits = jnp.dot(wmat, edge, preferred_element_type=jnp.float32) + bias
        gate = jax.nn.sigmoid(logits)
        o_ref[b] = (xb + gate * xb).astype(o_ref.dtype)        # weight * x + x


def _pick_batch_block(n, c, hw, itemsize, budget_bytes=4 << 20, max_blk=8):
    """Largest divisor of n (<= max_blk) whose double-buffered in+out tile fits the budget."""
    per_batch = 2 * c * hw * itemsize            # input + output tile per batch element
    best = 1
    for cand in range(1, min(n, max_blk) + 1):
        if n % cand == 0 and 2 * cand * per_batch <= budget_bytes:
            best = cand
    return best


def contrast_forward(x_nchw, conv_w, conv_b, bn_gamma, bn_beta, bn_mean, bn_var, eps=1e-5):
    """x_nchw: (N, C, H, W); conv_w: (C, C, 1, 1) PyTorch layout; BN params: (C,)."""
    n, c, h, w = x_nchw.shape
    hw = h * w
    itemsize = jnp.dtype(x_nchw.dtype).itemsize

    # Free reshape (contiguous trailing-dim collapse) — no transpose, no extra HBM traffic.
    x = x_nchw.reshape(n, c, hw)

    # Fold eval-mode BatchNorm into the 1x1 conv (exact).
    inv_std = 1.0 / jnp.sqrt(bn_var.astype(jnp.float32) + eps)
    scale = bn_gamma.astype(jnp.float32) * inv_std                        # (C,)
    w_eff = conv_w.reshape(c, c).astype(jnp.float32) * scale[:, None]     # (Cout, Cin)
    b_eff = ((conv_b.astype(jnp.float32) - bn_mean.astype(jnp.float32)) * scale
             + bn_beta.astype(jnp.float32)).reshape(c, 1)

    b_blk = _pick_batch_block(n, c, hw, itemsize)
    grid = (n // b_blk,)

    kernel = functools.partial(_contrast_kernel, width=w, b_blk=b_blk)

    cost = pl.CostEstimate(
        flops=2 * n * c * c * hw + 12 * n * c * hw,
        transcendentals=n * c * hw,
        bytes_accessed=2 * n * c * hw * itemsize + (c * c + 2 * c) * 4,
    )

    out = pl.pallas_call(
        kernel,
        out_shape=jax.ShapeDtypeStruct((n, c, hw), x.dtype),
        grid=grid,
        in_specs=[
            pl.BlockSpec((b_blk, c, hw), lambda i: (i, 0, 0)),
            pl.BlockSpec((c, c), lambda i: (0, 0)),
            pl.BlockSpec((c, 1), lambda i: (0, 0)),
        ],
        out_specs=pl.BlockSpec((b_blk, c, hw), lambda i: (i, 0, 0)),
        compiler_params=pltpu.CompilerParams(
            dimension_semantics=("parallel",),
            vmem_limit_bytes=32 * 1024 * 1024,
        ),
        cost_estimate=cost,
    )(x, w_eff, b_eff)

    return out.reshape(n, c, h, w)


def contrast_reference(x, conv_w, conv_b, bn_gamma, bn_beta, bn_mean, bn_var, eps=1e-5):
    """Pure-JAX reference of the PyTorch forward (NCHW, eval-mode BN)."""
    n, c, h, w = x.shape
    pooled = lax.reduce_window(
        x, jnp.array(0.0, x.dtype), lax.add,
        window_dimensions=(1, 1, 3, 3),
        window_strides=(1, 1, 1, 1),
        padding=((0, 0), (0, 0), (1, 1), (1, 1)),
    ) / 9.0
    edge = x - pooled
    y = jnp.einsum('oi,nihw->nohw', conv_w.reshape(c, c), edge) + conv_b.reshape(1, c, 1, 1)
    y_bn = (bn_gamma.reshape(1, c, 1, 1) * (y - bn_mean.reshape(1, c, 1, 1))
            / jnp.sqrt(bn_var.reshape(1, c, 1, 1) + eps) + bn_beta.reshape(1, c, 1, 1))
    gate = jax.nn.sigmoid(y_bn)
    return gate * x + x


if __name__ == "__main__":
    N, C, H, W = 2, 8, 16, 16

    key = jax.random.PRNGKey(0)
    kx, kw, kb, kg, kbe, km, kv = jax.random.split(key, 7)

    x = jax.random.normal(kx, (N, C, H, W), dtype=jnp.float32)
    # PyTorch parameter layouts: conv (Co, Ci, 1, 1), conv bias (Co,), BN params (C,)
    conv_w = 0.2 * jax.random.normal(kw, (C, C, 1, 1), dtype=jnp.float32)
    conv_b = 0.1 * jax.random.normal(kb, (C,), dtype=jnp.float32)
    bn_gamma = 1.0 + 0.1 * jax.random.normal(kg, (C,), dtype=jnp.float32)
    bn_beta = 0.1 * jax.random.normal(kbe, (C,), dtype=jnp.float32)
    bn_mean = 0.1 * jax.random.normal(km, (C,), dtype=jnp.float32)
    bn_var = jax.random.uniform(kv, (C,), dtype=jnp.float32, minval=0.5, maxval=1.5)

    out = contrast_forward(x, conv_w, conv_b, bn_gamma, bn_beta, bn_mean, bn_var)
    out = jax.block_until_ready(out)

    ref = contrast_reference(x, conv_w, conv_b, bn_gamma, bn_beta, bn_mean, bn_var)
    assert out.shape == (N, C, H, W)
    assert jnp.allclose(out, ref, rtol=1e-4, atol=1e-5), "mismatch vs reference"

    print("KERNEL_OK")
</pallas_src>

<mosaic_0001>
module attributes {stable_mosaic.version = 11 : i64} {
  func.func @_contrast_kernel(%arg0: i32, %arg1: memref<2x8x256xf32, #tpu.memory_space<vmem>>, %arg2: memref<8x8xf32, #tpu.memory_space<vmem>>, %arg3: memref<8x1xf32, #tpu.memory_space<vmem>>, %arg4: memref<2x8x256xf32, #tpu.memory_space<vmem>>) attributes {dimension_semantics = [#tpu.dimension_semantics<parallel>], iteration_bounds = array<i64: 1>, scalar_prefetch = 0 : i64, scratch_operands = 0 : i64, tpu.core_type = #tpu.core_type<tc>, window_params = [{transform_indices = @transform_0, window_bounds = array<i64: 2, 8, 256>}, {pipeline_mode = #tpu.pipeline_mode<synchronous>, transform_indices = @transform_1, window_bounds = array<i64: 8, 8>}, {pipeline_mode = #tpu.pipeline_mode<synchronous>, transform_indices = @transform_2, window_bounds = array<i64: 8, 1>}, {transform_indices = @transform_3, window_bounds = array<i64: 2, 8, 256>}]} {
    %0 = tpu.iota {dimensions = array<i32: 1>} : vector<1x256xi32>
    %c16_i32 = arith.constant 16 : i32
    %c0_i32 = arith.constant 0 : i32
    %1 = arith.cmpi eq, %c16_i32, %c0_i32 : i32
    %c1_i32 = arith.constant 1 : i32
    %2 = arith.select %1, %c1_i32, %c16_i32 : i32
    %3 = vector.broadcast %2 : i32 to vector<1x256xi32>
    %4 = arith.remsi %0, %3 : vector<1x256xi32>
    %c0_i32_0 = arith.constant 0 : i32
    %5 = vector.broadcast %c0_i32_0 : i32 to vector<1x256xi32>
    %6 = arith.cmpi ne, %4, %5 : vector<1x256xi32>
    %c0_i32_1 = arith.constant 0 : i32
    %7 = vector.broadcast %c0_i32_1 : i32 to vector<1x256xi32>
    %8 = arith.cmpi slt, %4, %7 : vector<1x256xi32>
    %c0_i32_2 = arith.constant 0 : i32
    %9 = arith.cmpi slt, %2, %c0_i32_2 : i32
    %10 = vector.broadcast %9 : i1 to vector<1x256xi1>
    %11 = vector.broadcast %10 : vector<1x256xi1> to vector<1x256xi1>
    %12 = arith.xori %8, %11 : vector<1x256xi1>
    %13 = arith.andi %12, %6 : vector<1x256xi1>
    %14 = vector.broadcast %2 : i32 to vector<1x256xi32>
    %15 = arith.addi %4, %14 : vector<1x256xi32>
    %16 = arith.select %13, %15, %4 : vector<1x256xi1>, vector<1x256xi32>
    %c0_i32_3 = arith.constant 0 : i32
    %17 = vector.broadcast %c0_i32_3 : i32 to vector<1x256xi32>
    %18 = arith.cmpi ne, %16, %17 : vector<1x256xi32>
    %c16_i32_4 = arith.constant 16 : i32
    %c0_i32_5 = arith.constant 0 : i32
    %19 = arith.cmpi eq, %c16_i32_4, %c0_i32_5 : i32
    %c1_i32_6 = arith.constant 1 : i32
    %20 = arith.select %19, %c1_i32_6, %c16_i32_4 : i32
    %21 = vector.broadcast %20 : i32 to vector<1x256xi32>
    %22 = arith.remsi %0, %21 : vector<1x256xi32>
    %c0_i32_7 = arith.constant 0 : i32
    %23 = vector.broadcast %c0_i32_7 : i32 to vector<1x256xi32>
    %24 = arith.cmpi ne, %22, %23 : vector<1x256xi32>
    %c0_i32_8 = arith.constant 0 : i32
    %25 = vector.broadcast %c0_i32_8 : i32 to vector<1x256xi32>
    %26 = arith.cmpi slt, %22, %25 : vector<1x256xi32>
    %c0_i32_9 = arith.constant 0 : i32
    %27 = arith.cmpi slt, %20, %c0_i32_9 : i32
    %28 = vector.broadcast %27 : i1 to vector<1x256xi1>
    %29 = vector.broadcast %28 : vector<1x256xi1> to vector<1x256xi1>
    %30 = arith.xori %26, %29 : vector<1x256xi1>
    %31 = arith.andi %30, %24 : vector<1x256xi1>
    %32 = vector.broadcast %20 : i32 to vector<1x256xi32>
    %33 = arith.addi %22, %32 : vector<1x256xi32>
    %34 = arith.select %31, %33, %22 : vector<1x256xi1>, vector<1x256xi32>
    %c15_i32 = arith.constant 15 : i32
    %35 = vector.broadcast %c15_i32 : i32 to vector<1x256xi32>
    %36 = arith.cmpi ne, %34, %35 : vector<1x256xi32>
    %c0 = arith.constant 0 : index
    %c0_10 = arith.constant 0 : index
    %37 = vector.load %arg2[%c0, %c0_10] : memref<8x8xf32, #tpu.memory_space<vmem>>, vector<8x8xf32>
    %c0_11 = arith.constant 0 : index
    %c0_12 = arith.constant 0 : index
    %38 = vector.load %arg3[%c0_11, %c0_12] : memref<8x1xf32, #tpu.memory_space<vmem>>, vector<8x1xf32>
    %c0_13 = arith.constant 0 : index
    %c0_14 = arith.constant 0 : index
    %c0_15 = arith.constant 0 : index
    %39 = vector.load %arg1[%c0_13, %c0_14, %c0_15] : memref<2x8x256xf32, #tpu.memory_space<vmem>>, vector<1x8x256xf32>
    %40 = vector.shape_cast %39 : vector<1x8x256xf32> to vector<8x256xf32>
    %cst = arith.constant 0.000000e+00 : f32
    %41 = vector.broadcast %cst : f32 to vector<8x1xf32>
    %42 = vector.extract_strided_slice %40 {offsets = [0, 0], sizes = [8, 255], strides = [1, 1]} : vector<8x256xf32> to vector<8x255xf32>
    %43 = tpu.concatenate %41, %42 in 1 : vector<8x1xf32>, vector<8x255xf32> -> vector<8x256xf32>
    %cst_16 = arith.constant 0.000000e+00 : f32
    %44 = vector.shape_cast %18 : vector<1x256xi1> to vector<1x256xi1>
    %45 = vector.broadcast %44 : vector<1x256xi1> to vector<8x256xi1>
    %46 = vector.broadcast %cst_16 : f32 to vector<8x256xf32>
    %47 = arith.select %45, %43, %46 : vector<8x256xi1>, vector<8x256xf32>
    %cst_17 = arith.constant 0.000000e+00 : f32
    %48 = vector.broadcast %cst_17 : f32 to vector<8x1xf32>
    %49 = vector.extract_strided_slice %40 {offsets = [0, 1], sizes = [8, 255], strides = [1, 1]} : vector<8x256xf32> to vector<8x255xf32>
    %50 = tpu.concatenate %49, %48 in 1 : vector<8x255xf32>, vector<8x1xf32> -> vector<8x256xf32>
    %cst_18 = arith.constant 0.000000e+00 : f32
    %51 = vector.shape_cast %36 : vector<1x256xi1> to vector<1x256xi1>
    %52 = vector.broadcast %51 : vector<1x256xi1> to vector<8x256xi1>
    %53 = vector.broadcast %cst_18 : f32 to vector<8x256xf32>
    %54 = arith.select %52, %50, %53 : vector<8x256xi1>, vector<8x256xf32>
    %55 = arith.addf %40, %47 : vector<8x256xf32>
    %56 = arith.addf %55, %54 : vector<8x256xf32>
    %cst_19 = arith.constant 0.000000e+00 : f32
    %57 = vector.broadcast %cst_19 : f32 to vector<8x16xf32>
    %58 = vector.extract_strided_slice %56 {offsets = [0, 0], sizes = [8, 240], strides = [1, 1]} : vector<8x256xf32> to vector<8x240xf32>
    %59 = tpu.concatenate %57, %58 in 1 : vector<8x16xf32>, vector<8x240xf32> -> vector<8x256xf32>
    %60 = arith.addf %56, %59 : vector<8x256xf32>
    %cst_20 = arith.constant 0.000000e+00 : f32
    %61 = vector.broadcast %cst_20 : f32 to vector<8x16xf32>
    %62 = vector.extract_strided_slice %56 {offsets = [0, 16], sizes = [8, 240], strides = [1, 1]} : vector<8x256xf32> to vector<8x240xf32>
    %63 = tpu.concatenate %62, %61 in 1 : vector<8x240xf32>, vector<8x16xf32> -> vector<8x256xf32>
    %64 = arith.addf %60, %63 : vector<8x256xf32>
    %cst_21 = arith.constant 0.111111112 : f32
    %65 = vector.broadcast %cst_21 : f32 to vector<8x256xf32>
    %66 = arith.mulf %64, %65 : vector<8x256xf32>
    %67 = arith.subf %40, %66 : vector<8x256xf32>
    %cst_22 = arith.constant dense<0.000000e+00> : vector<8x256xf32>
    %68 = tpu.matmul %37, %67, %cst_22 {dimension_numbers = #tpu.dot_dimension_numbers<[1], [0], [0], [1], [0, 0, 1, 1], [], []>} : vector<8x8xf32>, vector<8x256xf32>, vector<8x256xf32> -> vector<8x256xf32>
    %69 = vector.broadcast %38 : vector<8x1xf32> to vector<8x256xf32>
    %70 = arith.addf %68, %69 : vector<8x256xf32>
    %71 = arith.negf %70 : vector<8x256xf32>
    %72 = math.exp %71 : vector<8x256xf32>
    %cst_23 = arith.constant 1.000000e+00 : f32
    %73 = vector.broadcast %cst_23 : f32 to vector<8x256xf32>
    %74 = arith.addf %73, %72 : vector<8x256xf32>
    %75 = arith.divf %73, %74 : vector<8x256xf32>
    %76 = arith.mulf %75, %40 : vector<8x256xf32>
    %77 = arith.addf %40, %76 : vector<8x256xf32>
    %c0_24 = arith.constant 0 : index
    %c0_25 = arith.constant 0 : index
    %c0_26 = arith.constant 0 : index
    %78 = vector.load %arg4[%c0_24, %c0_25, %c0_26] : memref<2x8x256xf32, #tpu.memory_space<vmem>>, vector<1x8x256xf32>
    %79 = vector.shape_cast %78 : vector<1x8x256xf32> to vector<8x256xf32>
    %80 = vector.shape_cast %77 : vector<8x256xf32> to vector<1x8x256xf32>
    tpu.vector_store %arg4[%c0_24, %c0_25, %c0_26], %80 {strides = array<i32>} : memref<2x8x256xf32, #tpu.memory_space<vmem>>, vector<1x8x256xf32>,
    %c1 = arith.constant 1 : index
    %c0_27 = arith.constant 0 : index
    %c0_28 = arith.constant 0 : index
    %81 = vector.load %arg1[%c1, %c0_27, %c0_28] : memref<2x8x256xf32, #tpu.memory_space<vmem>>, vector<1x8x256xf32>
    %82 = vector.shape_cast %81 : vector<1x8x256xf32> to vector<8x256xf32>
    %cst_29 = arith.constant 0.000000e+00 : f32
    %83 = vector.broadcast %cst_29 : f32 to vector<8x1xf32>
    %84 = vector.extract_strided_slice %82 {offsets = [0, 0], sizes = [8, 255], strides = [1, 1]} : vector<8x256xf32> to vector<8x255xf32>
    %85 = tpu.concatenate %83, %84 in 1 : vector<8x1xf32>, vector<8x255xf32> -> vector<8x256xf32>
    %cst_30 = arith.constant 0.000000e+00 : f32
    %86 = vector.shape_cast %18 : vector<1x256xi1> to vector<1x256xi1>
    %87 = vector.broadcast %86 : vector<1x256xi1> to vector<8x256xi1>
    %88 = vector.broadcast %cst_30 : f32 to vector<8x256xf32>
    %89 = arith.select %87, %85, %88 : vector<8x256xi1>, vector<8x256xf32>
    %cst_31 = arith.constant 0.000000e+00 : f32
    %90 = vector.broadcast %cst_31 : f32 to vector<8x1xf32>
    %91 = vector.extract_strided_slice %82 {offsets = [0, 1], sizes = [8, 255], strides = [1, 1]} : vector<8x256xf32> to vector<8x255xf32>
    %92 = tpu.concatenate %91, %90 in 1 : vector<8x255xf32>, vector<8x1xf32> -> vector<8x256xf32>
    %cst_32 = arith.constant 0.000000e+00 : f32
    %93 = vector.shape_cast %36 : vector<1x256xi1> to vector<1x256xi1>
    %94 = vector.broadcast %93 : vector<1x256xi1> to vector<8x256xi1>
    %95 = vector.broadcast %cst_32 : f32 to vector<8x256xf32>
    %96 = arith.select %94, %92, %95 : vector<8x256xi1>, vector<8x256xf32>
    %97 = arith.addf %82, %89 : vector<8x256xf32>
    %98 = arith.addf %97, %96 : vector<8x256xf32>
    %cst_33 = arith.constant 0.000000e+00 : f32
    %99 = vector.broadcast %cst_33 : f32 to vector<8x16xf32>
    %100 = vector.extract_strided_slice %98 {offsets = [0, 0], sizes = [8, 240], strides = [1, 1]} : vector<8x256xf32> to vector<8x240xf32>
    %101 = tpu.concatenate %99, %100 in 1 : vector<8x16xf32>, vector<8x240xf32> -> vector<8x256xf32>
    %102 = arith.addf %98, %101 : vector<8x256xf32>
    %cst_34 = arith.constant 0.000000e+00 : f32
    %103 = vector.broadcast %cst_34 : f32 to vector<8x16xf32>
    %104 = vector.extract_strided_slice %98 {offsets = [0, 16], sizes = [8, 240], strides = [1, 1]} : vector<8x256xf32> to vector<8x240xf32>
    %105 = tpu.concatenate %104, %103 in 1 : vector<8x240xf32>, vector<8x16xf32> -> vector<8x256xf32>
    %106 = arith.addf %102, %105 : vector<8x256xf32>
    %cst_35 = arith.constant 0.111111112 : f32
    %107 = vector.broadcast %cst_35 : f32 to vector<8x256xf32>
    %108 = arith.mulf %106, %107 : vector<8x256xf32>
    %109 = arith.subf %82, %108 : vector<8x256xf32>
    %cst_36 = arith.constant dense<0.000000e+00> : vector<8x256xf32>
    %110 = tpu.matmul %37, %109, %cst_36 {dimension_numbers = #tpu.dot_dimension_numbers<[1], [0], [0], [1], [0, 0, 1, 1], [], []>} : vector<8x8xf32>, vector<8x256xf32>, vector<8x256xf32> -> vector<8x256xf32>
    %111 = vector.broadcast %38 : vector<8x1xf32> to vector<8x256xf32>
    %112 = arith.addf %110, %111 : vector<8x256xf32>
    %113 = arith.negf %112 : vector<8x256xf32>
    %114 = math.exp %113 : vector<8x256xf32>
    %cst_37 = arith.constant 1.000000e+00 : f32
    %115 = vector.broadcast %cst_37 : f32 to vector<8x256xf32>
    %116 = arith.addf %115, %114 : vector<8x256xf32>
    %117 = arith.divf %115, %116 : vector<8x256xf32>
    %118 = arith.mulf %117, %82 : vector<8x256xf32>
    %119 = arith.addf %82, %118 : vector<8x256xf32>
    %c1_38 = arith.constant 1 : index
    %c0_39 = arith.constant 0 : index
    %c0_40 = arith.constant 0 : index
    %120 = vector.load %arg4[%c1_38, %c0_39, %c0_40] : memref<2x8x256xf32, #tpu.memory_space<vmem>>, vector<1x8x256xf32>
    %121 = vector.shape_cast %120 : vector<1x8x256xf32> to vector<8x256xf32>
    %122 = vector.shape_cast %119 : vector<8x256xf32> to vector<1x8x256xf32>
    tpu.vector_store %arg4[%c1_38, %c0_39, %c0_40], %122 {strides = array<i32>} : memref<2x8x256xf32, #tpu.memory_space<vmem>>, vector<1x8x256xf32>,
    return
  }
  func.func @transform_0(%arg0: i32) -> (i32, i32, i32) {
    %c0_i32 = arith.constant 0 : i32
    %c0_i32_0 = arith.constant 0 : i32
    %c0_i32_1 = arith.constant 0 : i32
    return %arg0, %c0_i32, %c0_i32_0 : i32, i32, i32
  }
  func.func @transform_1(%arg0: i32) -> (i32, i32) {
    %c0_i32 = arith.constant 0 : i32
    %c0_i32_0 = arith.constant 0 : i32
    %c0_i32_1 = arith.constant 0 : i32
    return %c0_i32, %c0_i32_0 : i32, i32
  }
  func.func @transform_2(%arg0: i32) -> (i32, i32) {
    %c0_i32 = arith.constant 0 : i32
    %c0_i32_0 = arith.constant 0 : i32
    %c0_i32_1 = arith.constant 0 : i32
    return %c0_i32, %c0_i32_0 : i32, i32
  }
  func.func @transform_3(%arg0: i32) -> (i32, i32, i32) {
    %c0_i32 = arith.constant 0 : i32
    %c0_i32_0 = arith.constant 0 : i32
    %c0_i32_1 = arith.constant 0 : i32
    return %arg0, %c0_i32, %c0_i32_0 : i32, i32, i32
  }
}

</mosaic_0001>

<llo_original>
// kernel: tpu_custom_call.1
$region0: #{tpu_custom_call.1}
  #allocation0 [shape = 'u32[]', space=smem, size = 0x4, offset = 0x4, fixed_abs, tag = 'smem constant byte address 0x4 - core index']
  #allocation1 [shape = 'u32[144,128]{1,0:T(1,128)}', space=vmem, size = 0x12000, scoped, tag = 'internal scratch']
  %s0 = inlined_call_operand.hbm [shape: f32[2,8,256], index: 0, kind: input, shape index: {}]
  %s1 = inlined_call_operand.vmem [shape: f32[8,8], index: 1, kind: input, shape index: {}]
  %s2 = inlined_call_operand.vmem [shape: f32[8,1], index: 2, kind: input, shape index: {}]
  %s3 = inlined_call_operand.hbm [shape: f32[2,8,256], index: 3, kind: output, shape index: {}]
  %s4 = sld [smem:[#allocation0]]
  $region26: #{tpu_custom_call.1} parent=0
    _
  %s6 = ssub.s32 1, %s4
  %s7 = scalar_select 0, %s6, %s4
  $region1: #{tpu_custom_call.1} parent=0
    #allocation2 [shape = 'u8[16384]{0}', space=vmem, size = 0x4000, scoped, tag = 'input window, operand 0, single buffered']
    #allocation3 [shape = 's32[1]{0}', space=sflag, size = 0x4, scoped, tag = 'scoped memory for tpu_custom_call.1']
    #allocation4 [shape = 's32[1]{0}', space=sflag, size = 0x4, scoped, tag = 'scoped memory for tpu_custom_call.1']
    #allocation5 [shape = 'u8[16384]{0}', space=vmem, size = 0x4000, scoped, tag = 'output window, operand 0, single buffered']
    %8 = vsyncpa [#allocation3], 0
    %9 = vsyncpa [#allocation4], 0
    // Predicated region
    $region2: #{tpu_custom_call.1} parent=1 // pred_check
      _
    $region3: #{tpu_custom_call.1} parent=1 // pred_check_branch
      %11 = sbr.rel (0) target = $region5
    $region4: #{tpu_custom_call.1} parent=1 // pred_region
      %s13 = ssub.s32 512, 512
      %14 = vsyncadd [#allocation3], %s13
      %s15 = sshll.u32 [#allocation2], 4
      %s16 = int_to_ptr.vmem [resolvable:$true] %s15
      %21 = dma.hbm_to_vmem [thread:$0]  %s0, 512, %s16, [#allocation3], 256, 256, 16
    $region5: #{tpu_custom_call.1} parent=1 // pred_fallthru
      _
    // Predicated region
    $region6: #{tpu_custom_call.1} parent=1 // pred_check
      _
    $region7: #{tpu_custom_call.1} parent=1 // pred_check_branch
      %23 = sbr.rel (0) target = $region9
    $region8: #{tpu_custom_call.1} parent=1 // pred_region
      _
    $region9: #{tpu_custom_call.1} parent=1 // pred_fallthru
      _
    // Predicated region
    $region10: #{tpu_custom_call.1} parent=1 // pred_check
      _
    $region11: #{tpu_custom_call.1} parent=1 // pred_check_branch
      %25 = sbr.rel (0) target = $region13
    $region12: #{tpu_custom_call.1} parent=1 // pred_region
      _
    $region13: #{tpu_custom_call.1} parent=1 // pred_fallthru
      _
    // Predicated region
    $region14: #{tpu_custom_call.1} parent=1 // pred_check
      _
    $region15: #{tpu_custom_call.1} parent=1 // pred_check_branch
      %27 = sbr.rel (0) target = $region17
    $region16: #{tpu_custom_call.1} parent=1 // pred_region
      %28 = dma.done [#allocation3], 512
    $region17: #{tpu_custom_call.1} parent=1 // pred_fallthru
      _
    %v29 = vlaneseq
    %v30 = vand.u32 %v29, 127
    %v31 = vadd.s32 %v30, 128
    %vm32 = vcmp.lt.s32.totalorder %v30, 0
    %v33 = vsub.s32 0, %v30
    %v34 = vsel %vm32, %v33, %v30
    %v35 = vshrl.u32 %v34, 4
    %v36 = vand.u32 %v34, 15
    %v37 = vsub.s32 0, %v36
    %v38 = vsel %vm32, %v37, %v36
    %vm39 = vcmp.lt.s32.totalorder %v31, 0
    %v40 = vsub.s32 0, %v31
    %v41 = vsel %vm39, %v40, %v31
    %v42 = vshrl.u32 %v41, 4
    %v43 = vand.u32 %v41, 15
    %v44 = vsub.s32 0, %v43
    %v45 = vsel %vm39, %v44, %v43
    %vm46 = vcmp.ne.s32.totalorder %v38, 0
    %vm47 = vcmp.ne.s32.totalorder %v45, 0
    %vm48 = vcmp.lt.s32.totalorder %v38, 0
    %vm49 = vcmp.lt.s32.totalorder %v45, 0
    %vm50 = vmand %vm48, %vm46
    %vm51 = vmand %vm49, %vm47
    %v52 = vadd.s32 %v38, 16
    %v53 = vadd.s32 %v45, 16
    %v54 = vsel %vm50, %v52, %v38
    %v55 = vsel %vm51, %v53, %v45
    %vm56 = vcmp.ne.s32.totalorder %v54, 0
    %vm57 = vcmp.ne.s32.totalorder %v55, 0
    %vm58 = vcmp.ne.s32.totalorder %v54, 15
    %vm59 = vcmp.ne.s32.totalorder %v55, 15
    %v60 = vld [vmem:[%s1] sm:$0xff]
    %v61 = vld [vmem:[%s2] sm:$0xff]
    %v62 = vld [vmem:[#allocation2] sm:$0xff]
    %v63 = vld [vmem:[#allocation2 + $0x8] sm:$0xff]
    %66 = vrot.lane.b32.xlu0 %v62, 1
    %v67 = vpop.permute.xlu0 %66
    %68 = vrot.lane.b32.xlu0 %v63, 1
    %v69 = vpop.permute.xlu0 %68
    %vm70 = vcmask 7168
    %v71 = vsel %vm70, %v67, %v69
    %v74 = vsel %vm70, 0.0, %v67
    %v75 = vsel %vm56, 1, 0
    %v76 = vsel %vm57, 1, 0
    %vm77 = vcmp.eq.s32.totalorder %v75, 1
    %vm78 = vcmp.eq.s32.totalorder %v76, 1
    %v79 = vsel %vm77, %v74, 0.0
    %v80 = vsel %vm78, %v71, 0.0
    %81 = vrot.lane.b32.xlu0 %v62, 127
    %v82 = vpop.permute.xlu0 %81
    %83 = vrot.lane.b32.xlu0 %v63, 127
    %v84 = vpop.permute.xlu0 %83
    %vm85 = vcmask 1039360
    %v86 = vsel %vm85, %v82, %v84
    %v89 = vsel %vm85, %v84, 0.0
    %v90 = vsel %vm58, 1, 0
    %v91 = vsel %vm59, 1, 0
    %vm92 = vcmp.eq.s32.totalorder %v90, 1
    %vm93 = vcmp.eq.s32.totalorder %v91, 1
    %v94 = vsel %vm92, %v86, 0.0
    %v95 = vsel %vm93, %v89, 0.0
    %v96 = vadd.f32 %v62, %v79
    %v97 = vadd.f32 %v63, %v80
    %v98 = vadd.f32 %v96, %v94
    %v99 = vadd.f32 %v97, %v95
    %102 = vrot.lane.b32.xlu0 %v98, 16
    %v103 = vpop.permute.xlu0 %102
    %104 = vrot.lane.b32.xlu0 %v99, 16
    %v105 = vpop.permute.xlu0 %104
    %vm106 = vcmask 130048
    %v107 = vsel %vm106, %v103, %v105
    %v110 = vsel %vm106, 0.0, %v103
    %v111 = vadd.f32 %v98, %v110
    %v112 = vadd.f32 %v99, %v107
    %113 = vrot.lane.b32.xlu0 %v98, 112
    %v114 = vpop.permute.xlu0 %113
    %115 = vrot.lane.b32.xlu0 %v99, 112
    %v116 = vpop.permute.xlu0 %115
    %vm117 = vcmask 916480
    %v118 = vsel %vm117, %v114, %v116
    %v121 = vsel %vm117, %v116, 0.0
    %v122 = vadd.f32 %v111, %v118
    %v123 = vadd.f32 %v112, %v121
    %v124 = vmul.f32 %v122, 0.11111111
    %v125 = vmul.f32 %v123, 0.11111111
    %v126 = vsub.f32 %v62, %v124
    %v127 = vsub.f32 %v63, %v125
    %129 = vset.pattern.permute.xlu0 0
    %130 = vperm.xlu0 %129, %v61
    %v131 = vpop.permute.xlu0 %130
    %vm133 = vcmask 64512
    %v135 = vsel %vm133, %v60, 0
    %137 = vmatprep.subr.mxu0 0.0
    %138 = vmatpush1.msra.mxu0 0.0
    %139 = vmatprep.subr.mxu0 0.0
    %140 = vmatpush1.msra.mxu0 0.0
    %141 = vmatprep.subr.mxu0 0.0
    %142 = vmatpush1.msra.mxu0 0.0
    %143 = vmatprep.subr.mxu0 0.0
    %144 = vmatpush1.msra.mxu0 0.0
    %145 = vmatprep.subr.mxu0 0.0
    %146 = vmatpush1.msra.mxu0 0.0
    %147 = vmatprep.subr.mxu0 0.0
    %148 = vmatpush1.msra.mxu0 0.0
    %149 = vmatprep.subr.mxu0 0.0
    %150 = vmatpush1.msra.mxu0 0.0
    %151 = vmatprep.subr.mxu0 0.0
    %152 = vmatpush1.msra.mxu0 0.0
    %153 = vmatprep.subr.mxu0 0.0
    %154 = vmatpush1.msra.mxu0 0.0
    %155 = vmatprep.subr.mxu0 0.0
    %156 = vmatpush1.msra.mxu0 0.0
    %157 = vmatprep.subr.mxu0 0.0
    %158 = vmatpush1.msra.mxu0 0.0
    %159 = vmatprep.subr.mxu0 0.0
    %160 = vmatpush1.msra.mxu0 0.0
    %161 = vmatprep.subr.mxu0 0.0
    %162 = vmatpush1.msra.mxu0 0.0
    %163 = vmatprep.subr.mxu0 0.0
    %164 = vmatpush1.msra.mxu0 0.0
    %165 = vmatprep.subr.mxu0 0.0
    %166 = vmatpush1.msra.mxu0 0.0
    %167 = vmatprep.subr.mxu0 %v127
    %168 = vmatpush1.msra.mxu0 %v126
    %169 = vmatprep.subr.mxu0 0.0
    %170 = vmatpush2.msra.mxu0 0.0
    %171 = vmatprep.subr.mxu0 0.0
    %172 = vmatpush2.msra.mxu0 0.0
    %173 = vmatprep.subr.mxu0 0.0
    %174 = vmatpush2.msra.mxu0 0.0
    %175 = vmatprep.subr.mxu0 0.0
    %176 = vmatpush2.msra.mxu0 0.0
    %177 = vmatprep.subr.mxu0 0.0
    %178 = vmatpush2.msra.mxu0 0.0
    %179 = vmatprep.subr.mxu0 0.0
    %180 = vmatpush2.msra.mxu0 0.0
    %181 = vmatprep.subr.mxu0 0.0
    %182 = vmatpush2.msra.mxu0 0.0
    %183 = vmatprep.subr.mxu0 0.0
    %184 = vmatpush2.msra.mxu0 0.0
    %185 = vmatprep.subr.mxu0 0.0
    %186 = vmatpush2.msra.mxu0 0.0
    %187 = vmatprep.subr.mxu0 0.0
    %188 = vmatpush2.msra.mxu0 0.0
    %189 = vmatprep.subr.mxu0 0.0
    %190 = vmatpush2.msra.mxu0 0.0
    %191 = vmatprep.subr.mxu0 0.0
    %192 = vmatpush2.msra.mxu0 0.0
    %193 = vmatprep.subr.mxu0 0.0
    %194 = vmatpush2.msra.mxu0 0.0
    %195 = vmatprep.subr.mxu0 0.0
    %196 = vmatpush2.msra.mxu0 0.0
    %197 = vmatprep.subr.mxu0 0.0
    %198 = vmatpush2.msra.mxu0 0.0
    %199 = vmatprep.subr.mxu0 0.0
    %200 = vmatpush2.msra.mxu0 0.0
    %201 = vmatprep.mubr.f32.mxu0 0.0
    %202 = vmatmul.mubr.f32.gmra.mxu0 %v135
    %v203 = vpop.f32.mrf.mxu0
    %v204 = vadd.f32 %v131, %v203
    %v205 = vpop.f32.mrf.mxu0
    %v206 = vadd.f32 %v131, %v205
    %207 = vdwg.mxu0
    %v208 = vxor.u32 %v204, 2147483648
    %v209 = vxor.u32 %v206, 2147483648
    %v210 = vmul.f32 %v208, 1.442695
    %v211 = vpow.pop %v210
    %v212 = vmul.f32 %v209, 1.442695
    %v213 = vpow.pop %v212
    %v214 = vadd.f32 %v211, 1.0
    %v215 = vadd.f32 %v213, 1.0
    %v216 = vrcp.pop %v214
    %v217 = vmul.f32 1.0, %v216
    %v218 = vrcp.pop %v215
    %v219 = vmul.f32 1.0, %v218
    %v220 = vmul.f32 %v217, %v62
    %v221 = vmul.f32 %v219, %v63
    %v222 = vadd.f32 %v62, %v220
    %v223 = vadd.f32 %v63, %v221
    %224 = vst [vmem:[#allocation5] sm:$0xff] %v222
    %225 = vst [vmem:[#allocation5 + $0x8] sm:$0xff] %v223
    %s226 = scalar_lea.vmem [#allocation2], 16
    %v227 = vld [vmem:[%s226] sm:$0xff]
    %v228 = vld [vmem:[%s226 + $0x8] sm:$0xff]
    %231 = vrot.lane.b32.xlu0 %v227, 1
    %v232 = vpop.permute.xlu0 %231
    %233 = vrot.lane.b32.xlu0 %v228, 1
    %v234 = vpop.permute.xlu0 %233
    %v235 = vsel %vm70, %v232, %v234
    %v238 = vsel %vm70, 0.0, %v232
    %v239 = vsel %vm77, %v238, 0.0
    %v240 = vsel %vm78, %v235, 0.0
    %241 = vrot.lane.b32.xlu0 %v227, 127
    %v242 = vpop.permute.xlu0 %241
    %243 = vrot.lane.b32.xlu0 %v228, 127
    %v244 = vpop.permute.xlu0 %243
    %v245 = vsel %vm85, %v242, %v244
    %v248 = vsel %vm85, %v244, 0.0
    %v249 = vsel %vm92, %v245, 0.0
    %v250 = vsel %vm93, %v248, 0.0
    %v251 = vadd.f32 %v227, %v239
    %v252 = vadd.f32 %v228, %v240
    %v253 = vadd.f32 %v251, %v249
    %v254 = vadd.f32 %v252, %v250
    %257 = vrot.lane.b32.xlu0 %v253, 16
    %v258 = vpop.permute.xlu0 %257
    %259 = vrot.lane.b32.xlu0 %v254, 16
    %v260 = vpop.permute.xlu0 %259
    %v261 = vsel %vm106, %v258, %v260
    %v264 = vsel %vm106, 0.0, %v258
    %v265 = vadd.f32 %v253, %v264
    %v266 = vadd.f32 %v254, %v261
    %267 = vrot.lane.b32.xlu0 %v253, 112
    %v268 = vpop.permute.xlu0 %267
    %269 = vrot.lane.b32.xlu0 %v254, 112
    %v270 = vpop.permute.xlu0 %269
    %v271 = vsel %vm117, %v268, %v270
    %v274 = vsel %vm117, %v270, 0.0
    %v275 = vadd.f32 %v265, %v271
    %v276 = vadd.f32 %v266, %v274
    %v277 = vmul.f32 %v275, 0.11111111
    %v278 = vmul.f32 %v276, 0.11111111
    %v279 = vsub.f32 %v227, %v277
    %v280 = vsub.f32 %v228, %v278
    %281 = vmatprep.subr.mxu0 0.0
    %282 = vmatpush1.msra.mxu0 0.0
    %283 = vmatprep.subr.mxu0 0.0
    %284 = vmatpush1.msra.mxu0 0.0
    %285 = vmatprep.subr.mxu0 0.0
    %286 = vmatpush1.msra.mxu0 0.0
    %287 = vmatprep.subr.mxu0 0.0
    %288 = vmatpush1.msra.mxu0 0.0
    %289 = vmatprep.subr.mxu0 0.0
    %290 = vmatpush1.msra.mxu0 0.0
    %291 = vmatprep.subr.mxu0 0.0
    %292 = vmatpush1.msra.mxu0 0.0
    %293 = vmatprep.subr.mxu0 0.0
    %294 = vmatpush1.msra.mxu0 0.0
    %295 = vmatprep.subr.mxu0 0.0
    %296 = vmatpush1.msra.mxu0 0.0
    %297 = vmatprep.subr.mxu0 0.0
    %298 = vmatpush1.msra.mxu0 0.0
    %299 = vmatprep.subr.mxu0 0.0
    %300 = vmatpush1.msra.mxu0 0.0
    %301 = vmatprep.subr.mxu0 0.0
    %302 = vmatpush1.msra.mxu0 0.0
    %303 = vmatprep.subr.mxu0 0.0
    %304 = vmatpush1.msra.mxu0 0.0
    %305 = vmatprep.subr.mxu0 0.0
    %306 = vmatpush1.msra.mxu0 0.0
    %307 = vmatprep.subr.mxu0 0.0
    %308 = vmatpush1.msra.mxu0 0.0
    %309 = vmatprep.subr.mxu0 0.0
    %310 = vmatpush1.msra.mxu0 0.0
    %311 = vmatprep.subr.mxu0 %v280
    %312 = vmatpush1.msra.mxu0 %v279
    %313 = vmatprep.subr.mxu0 0.0
    %314 = vmatpush2.msra.mxu0 0.0
    %315 = vmatprep.subr.mxu0 0.0
    %316 = vmatpush2.msra.mxu0 0.0
    %317 = vmatprep.subr.mxu0 0.0
    %318 = vmatpush2.msra.mxu0 0.0
    %319 = vmatprep.subr.mxu0 0.0
    %320 = vmatpush2.msra.mxu0 0.0
    %321 = vmatprep.subr.mxu0 0.0
    %322 = vmatpush2.msra.mxu0 0.0
    %323 = vmatprep.subr.mxu0 0.0
    %324 = vmatpush2.msra.mxu0 0.0
    %325 = vmatprep.subr.mxu0 0.0
    %326 = vmatpush2.msra.mxu0 0.0
    %327 = vmatprep.subr.mxu0 0.0
    %328 = vmatpush2.msra.mxu0 0.0
    %329 = vmatprep.subr.mxu0 0.0
    %330 = vmatpush2.msra.mxu0 0.0
    %331 = vmatprep.subr.mxu0 0.0
    %332 = vmatpush2.msra.mxu0 0.0
    %333 = vmatprep.subr.mxu0 0.0
    %334 = vmatpush2.msra.mxu0 0.0
    %335 = vmatprep.subr.mxu0 0.0
    %336 = vmatpush2.msra.mxu0 0.0
    %337 = vmatprep.subr.mxu0 0.0
    %338 = vmatpush2.msra.mxu0 0.0
    %339 = vmatprep.subr.mxu0 0.0
    %340 = vmatpush2.msra.mxu0 0.0
    %341 = vmatprep.subr.mxu0 0.0
    %342 = vmatpush2.msra.mxu0 0.0
    %343 = vmatprep.subr.mxu0 0.0
    %344 = vmatpush2.msra.mxu0 0.0
    %345 = vmatprep.mubr.f32.mxu0 0.0
    %346 = vmatmul.mubr.f32.gmra.mxu0 %v135
    %v347 = vpop.f32.mrf.mxu0
    %v348 = vadd.f32 %v131, %v347
    %v349 = vpop.f32.mrf.mxu0
    %v350 = vadd.f32 %v131, %v349
    %351 = vdwg.mxu0
    %v352 = vxor.u32 %v348, 2147483648
    %v353 = vxor.u32 %v350, 2147483648
    %v354 = vmul.f32 %v352, 1.442695
    %v355 = vpow.pop %v354
    %v356 = vmul.f32 %v353, 1.442695
    %v357 = vpow.pop %v356
    %v358 = vadd.f32 %v355, 1.0
    %v359 = vadd.f32 %v357, 1.0
    %v360 = vrcp.pop %v358
    %v361 = vmul.f32 1.0, %v360
    %v362 = vrcp.pop %v359
    %v363 = vmul.f32 1.0, %v362
    %v364 = vmul.f32 %v361, %v227
    %v365 = vmul.f32 %v363, %v228
    %v366 = vadd.f32 %v227, %v364
    %v367 = vadd.f32 %v228, %v365
    %s368 = scalar_lea.vmem [#allocation5], 16
    %369 = vst [vmem:[%s368] sm:$0xff] %v366
    %370 = vst [vmem:[%s368 + $0x8] sm:$0xff] %v367
    // Predicated region
    $region18: #{tpu_custom_call.1} parent=1 // pred_check
      _
    $region19: #{tpu_custom_call.1} parent=1 // pred_check_branch
      %372 = sbr.rel (0) target = $region21
    $region20: #{tpu_custom_call.1} parent=1 // pred_region
      %s374 = ssub.s32 512, 512
      %375 = vsyncadd [#allocation4], %s374
      %s376 = sshll.u32 [#allocation5], 4
      %s377 = int_to_ptr.vmem [resolvable:$true] %s376
      %382 = dma.vmem_to_hbm [thread:$0]  %s377, 512, %s3, [#allocation4], 256, 256, 16
    $region21: #{tpu_custom_call.1} parent=1 // pred_fallthru
      _
    // Predicated region
    $region22: #{tpu_custom_call.1} parent=1 // pred_check
      _
    $region23: #{tpu_custom_call.1} parent=1 // pred_check_branch
      %384 = sbr.rel (0) target = $region25
    $region24: #{tpu_custom_call.1} parent=1 // pred_region
      %385 = dma.done [#allocation4], 512
    $region25: #{tpu_custom_call.1} parent=1 // pred_fallthru
      _
    %386 = vsyncpa [#allocation3], 1
    %387 = vsyncpa [#allocation4], 1

</llo_original>
